<compile_context>
chip_gen: v5e
topology: v5e:2x2
jax: 0.10.0
libtpu: 0.0.40
codegen_flags: <defaults>
</compile_context>

<pallas_src>
import jax
import jax.numpy as jnp
from jax import lax
from jax.experimental import pallas as pl
from jax.experimental.pallas import tpu as pltpu


def _round_up(x, m):
    return ((x + m - 1) // m) * m


def _vmem_capacity_bytes():
    try:
        return int(pltpu.get_tpu_info().vmem_capacity_bytes)
    except Exception:
        # Conservative fallback: assume the smallest (v7x-class, 64 MiB) VMEM.
        return 64 * 1024 * 1024


def _lse_argmax_kernel(logits_ref, lse_ref, pred_ref):
    """Per-row logsumexp and argmax over a [TB, C] logits tile."""
    logits = logits_ref[...].astype(jnp.float32)          # [TB, C] (upcast bf16)
    TB, C = logits.shape

    m = jnp.max(logits, axis=-1, keepdims=True)            # [TB, 1]
    shifted = logits - m                                    # reused for exp & argmax
    sumexp = jnp.sum(jnp.exp(shifted), axis=-1, keepdims=True)
    lse_ref[...] = m + jnp.log(sumexp)                      # [TB, 1] f32

    # Argmax = first index where logits hit the row max (matches jnp/torch
    # argmax first-max tie-break).  shifted == 0.0 is exact for the max entry.
    col = lax.broadcasted_iota(jnp.int32, (TB, C), 1)
    pred_ref[...] = jnp.min(jnp.where(shifted == 0.0, col, C),
                            axis=-1, keepdims=True)         # [TB, 1] i32


def hierarchical_cross_entropy_loss(outputs, targets, genus_ids, family_ids,
                                    block_rows=None):
    """outputs: [B, C] float (f32 or bf16), targets: [B] int,
    genus_ids/family_ids: [C] int class->genus / class->family lookup tables."""
    B, C = outputs.shape
    targets = targets.astype(jnp.int32)
    genus_ids = genus_ids.astype(jnp.int32)
    family_ids = family_ids.astype(jnp.int32)

    itemsize = jnp.dtype(outputs.dtype).itemsize
    # Sub-32-bit dtypes pack 2 rows per sublane: align bf16 tiles to 16 rows.
    sub = 16 if itemsize < 4 else 8

    # Generation-aware budgets.
    vmem_cap = _vmem_capacity_bytes()
    if vmem_cap <= 64 * 1024 * 1024:          # v7x-class: 64 MiB VMEM per TC
        tile_target = 5 * 1024 * 1024         # ~4-6 MiB logits tile
        vmem_ceiling = 48 * 1024 * 1024       # leave headroom for internal scratch
    else:                                      # v5e / v6e: 128 MiB VMEM
        tile_target = 16 * 1024 * 1024
        vmem_ceiling = 96 * 1024 * 1024

    # Guard: a single row-tile must fit comfortably (double-buffered + f32
    # upcast temp) in the VMEM budget.
    min_tile_bytes = sub * max(C, 1) * itemsize
    if 4 * min_tile_bytes > vmem_ceiling:
        # TODO(synk): add a C-tiled online-softmax + streaming-argmax variant
        # for very large vocabularies instead of a single-pass [rows, C] tile.
        raise ValueError(f"num_classes={C} too large for a single-pass tile "
                         f"on this TPU (VMEM={vmem_cap} bytes)")

    if block_rows is None:
        cap = (tile_target // (itemsize * max(C, 1))) // sub * sub
        cap = max(sub, min(2048, cap))
        block_rows = min(cap, _round_up(B, sub))
    tb = max(sub, _round_up(block_rows, sub))

    b_padded = _round_up(B, tb)
    pad = b_padded - B
    outputs_p = jnp.pad(outputs, ((0, pad), (0, 0))) if pad else outputs
    num_blocks = b_padded // tb

    # Working set ~= 2 pipelined input buffers + f32 upcast + elementwise temps.
    tile_bytes = tb * C * itemsize
    vmem_limit = int(min(vmem_ceiling, max(32 * 1024 * 1024, 6 * tile_bytes)))

    lse, pred = pl.pallas_call(
        _lse_argmax_kernel,
        out_shape=(jax.ShapeDtypeStruct((b_padded, 1), jnp.float32),
                   jax.ShapeDtypeStruct((b_padded, 1), jnp.int32)),
        grid=(num_blocks,),
        in_specs=[pl.BlockSpec((tb, C), lambda i: (i, 0))],         # logits tile
        out_specs=(pl.BlockSpec((tb, 1), lambda i: (i, 0)),          # lse per row
                   pl.BlockSpec((tb, 1), lambda i: (i, 0))),         # pred per row
        compiler_params=pltpu.CompilerParams(
            # Per-block outputs -> batch axis is race-free; both v7x cores run.
            dimension_semantics=("parallel",),
            vmem_limit_bytes=vmem_limit,
        ),
    )(outputs_p)

    # Drop rows introduced by batch padding before any reduction.
    lse = lse[:B, 0]
    pred = pred[:B, 0]

    # O(B) epilogue in plain XLA: target-logit gather, taxonomy lookups,
    # hierarchical weights and the mean over the *true* batch size.
    tgt_logit = jnp.take_along_axis(outputs.astype(jnp.float32),
                                    targets[:, None], axis=-1)[:, 0]
    ce = lse - tgt_logit
    genus_mask = (genus_ids[targets] != genus_ids[pred]).astype(jnp.float32)
    family_mask = (family_ids[targets] != family_ids[pred]).astype(jnp.float32)
    weights = 1.0 + 0.5 * genus_mask + 0.5 * family_mask
    return jnp.mean(ce * weights)


def _reference_loss(outputs, targets, genus_ids, family_ids):
    outputs = outputs.astype(jnp.float32)
    lse = jax.scipy.special.logsumexp(outputs, axis=-1)
    tgt_logit = jnp.take_along_axis(outputs, targets[:, None], axis=-1)[:, 0]
    ce = lse - tgt_logit
    pred = jnp.argmax(outputs, axis=-1)
    gm = (genus_ids[targets] != genus_ids[pred]).astype(jnp.float32)
    fm = (family_ids[targets] != family_ids[pred]).astype(jnp.float32)
    w = 1.0 + 0.5 * gm + 0.5 * fm
    return jnp.mean(ce * w)


if __name__ == "__main__":
    key = jax.random.PRNGKey(0)

    # TODO(synk): the original module parses gene_to_family.txt and species
    # strings on the host; that host-side preprocessing is represented here by
    # deterministic integer class->genus and class->family lookup tables.

    # Case 1: single block, batch divisible by 8, f32.
    B1, C1 = 8, 16
    k1, k2, k3, k4, k5, k6 = jax.random.split(key, 6)
    out1 = jax.random.normal(k1, (B1, C1), dtype=jnp.float32)
    tgt1 = jax.random.randint(k2, (B1,), 0, C1, dtype=jnp.int32)
    genus1 = jnp.arange(C1, dtype=jnp.int32) // 2       # 2 species per genus
    family1 = genus1 // 2                               # 2 genera per family
    loss1 = jax.block_until_ready(
        hierarchical_cross_entropy_loss(out1, tgt1, genus1, family1))
    ref1 = jax.block_until_ready(_reference_loss(out1, tgt1, genus1, family1))
    assert jnp.allclose(loss1, ref1, rtol=1e-5, atol=1e-5), (loss1, ref1)

    # Case 2: multiple grid blocks + batch padding (B=13 with 8-row tiles).
    B2, C2 = 13, 24
    out2 = jax.random.normal(k3, (B2, C2), dtype=jnp.float32)
    tgt2 = jax.random.randint(k4, (B2,), 0, C2, dtype=jnp.int32)
    genus2 = jnp.arange(C2, dtype=jnp.int32) // 3
    family2 = genus2 // 2
    loss2 = jax.block_until_ready(
        hierarchical_cross_entropy_loss(out2, tgt2, genus2, family2, block_rows=8))
    ref2 = jax.block_until_ready(_reference_loss(out2, tgt2, genus2, family2))
    assert jnp.allclose(loss2, ref2, rtol=1e-5, atol=1e-5), (loss2, ref2)

    # Case 3: bf16 logits (exercises 16-row sublane alignment + f32 upcast).
    B3, C3 = 16, 128
    out3 = jax.random.normal(k5, (B3, C3), dtype=jnp.float32).astype(jnp.bfloat16)
    tgt3 = jax.random.randint(k6, (B3,), 0, C3, dtype=jnp.int32)
    genus3 = jnp.arange(C3, dtype=jnp.int32) // 4
    family3 = genus3 // 4
    loss3 = jax.block_until_ready(
        hierarchical_cross_entropy_loss(out3, tgt3, genus3, family3))
    ref3 = jax.block_until_ready(_reference_loss(out3, tgt3, genus3, family3))
    assert jnp.allclose(loss3, ref3, rtol=1e-5, atol=1e-5), (loss3, ref3)

    print("KERNEL_OK")
</pallas_src>

<mosaic_0001>
module attributes {stable_mosaic.version = 11 : i64} {
  func.func @_lse_argmax_kernel(%arg0: i32, %arg1: memref<8x16xf32, #tpu.memory_space<vmem>>, %arg2: memref<8x1xf32, #tpu.memory_space<vmem>>, %arg3: memref<8x1xi32, #tpu.memory_space<vmem>>) attributes {dimension_semantics = [#tpu.dimension_semantics<parallel>], iteration_bounds = array<i64: 1>, scalar_prefetch = 0 : i64, scratch_operands = 0 : i64, tpu.core_type = #tpu.core_type<tc>, window_params = [{transform_indices = @transform_0, window_bounds = array<i64: 8, 16>}, {transform_indices = @transform_1, window_bounds = array<i64: 8, 1>}, {transform_indices = @transform_2, window_bounds = array<i64: 8, 1>}]} {
    %c0 = arith.constant 0 : index
    %c0_0 = arith.constant 0 : index
    %0 = vector.load %arg1[%c0, %c0_0] : memref<8x16xf32, #tpu.memory_space<vmem>>, vector<8x16xf32>
    %cst = arith.constant dense<0xFF800000> : vector<8xf32>
    %1 = vector.multi_reduction <maximumf>, %0, %cst [1] : vector<8x16xf32> to vector<8xf32>
    %2 = vector.shape_cast %1 : vector<8xf32> to vector<8x1xf32>
    %3 = vector.broadcast %2 : vector<8x1xf32> to vector<8x16xf32>
    %4 = arith.subf %0, %3 : vector<8x16xf32>
    %5 = math.exp %4 : vector<8x16xf32>
    %cst_1 = arith.constant dense<0.000000e+00> : vector<8xf32>
    %6 = vector.multi_reduction <add>, %5, %cst_1 [1] : vector<8x16xf32> to vector<8xf32>
    %7 = vector.shape_cast %6 : vector<8xf32> to vector<8x1xf32>
    %8 = math.log %7 : vector<8x1xf32>
    %9 = arith.addf %2, %8 : vector<8x1xf32>
    %c0_2 = arith.constant 0 : index
    %c0_3 = arith.constant 0 : index
    %10 = vector.load %arg2[%c0_2, %c0_3] : memref<8x1xf32, #tpu.memory_space<vmem>>, vector<8x1xf32>
    tpu.vector_store %arg2[%c0_2, %c0_3], %9 {strides = array<i32>} : memref<8x1xf32, #tpu.memory_space<vmem>>, vector<8x1xf32>,
    %11 = tpu.iota {dimensions = array<i32: 1>} : vector<8x16xi32>
    %cst_4 = arith.constant 0.000000e+00 : f32
    %12 = vector.broadcast %cst_4 : f32 to vector<8x16xf32>
    %13 = arith.cmpf oeq, %4, %12 : vector<8x16xf32>
    %c16_i32 = arith.constant 16 : i32
    %14 = vector.broadcast %c16_i32 : i32 to vector<8x16xi32>
    %15 = arith.select %13, %11, %14 : vector<8x16xi1>, vector<8x16xi32>
    %cst_5 = arith.constant dense<2147483647> : vector<8xi32>
    %16 = vector.multi_reduction <minsi>, %15, %cst_5 [1] : vector<8x16xi32> to vector<8xi32>
    %17 = vector.shape_cast %16 : vector<8xi32> to vector<8x1xi32>
    %c0_6 = arith.constant 0 : index
    %c0_7 = arith.constant 0 : index
    %18 = vector.load %arg3[%c0_6, %c0_7] : memref<8x1xi32, #tpu.memory_space<vmem>>, vector<8x1xi32>
    tpu.vector_store %arg3[%c0_6, %c0_7], %17 {strides = array<i32>} : memref<8x1xi32, #tpu.memory_space<vmem>>, vector<8x1xi32>,
    return
  }
  func.func @transform_0(%arg0: i32) -> (i32, i32) {
    %c0_i32 = arith.constant 0 : i32
    %c0_i32_0 = arith.constant 0 : i32
    return %arg0, %c0_i32 : i32, i32
  }
  func.func @transform_1(%arg0: i32) -> (i32, i32) {
    %c0_i32 = arith.constant 0 : i32
    %c0_i32_0 = arith.constant 0 : i32
    return %arg0, %c0_i32 : i32, i32
  }
  func.func @transform_2(%arg0: i32) -> (i32, i32) {
    %c0_i32 = arith.constant 0 : i32
    %c0_i32_0 = arith.constant 0 : i32
    return %arg0, %c0_i32 : i32, i32
  }
}

</mosaic_0001>

<llo_original>
// kernel: tpu_custom_call.1
$region0: #{tpu_custom_call.1}
  #allocation0 [shape = 'u32[]', space=smem, size = 0x4, offset = 0x4, fixed_abs, tag = 'smem constant byte address 0x4 - core index']
  #allocation1 [shape = 'u32[72,128]{1,0:T(1,128)}', space=vmem, size = 0x9000, scoped, tag = 'internal scratch']
  %s0 = inlined_call_operand.hbm [shape: f32[8,16], index: 0, kind: input, shape index: {}]
  %s1 = inlined_call_operand.vmem [shape: f32[8,1], index: 1, kind: output, shape index: {0}]
  %s2 = inlined_call_operand.vmem [shape: s32[8,1], index: 2, kind: output, shape index: {1}]
  %3 = xla_tuple %s1, %s2
  %s4 = sld [smem:[#allocation0]]
  $region26: #{tpu_custom_call.1} parent=0
    _
  %s6 = ssub.s32 1, %s4
  %s7 = scalar_select 0, %s6, %s4
  $region1: #{tpu_custom_call.1} parent=0
    #allocation2 [shape = 'u8[4096]{0}', space=vmem, size = 0x1000, scoped, tag = 'input window, operand 0, single buffered']
    #allocation3 [shape = 's32[1]{0}', space=sflag, size = 0x4, scoped, tag = 'scoped memory for tpu_custom_call.1']
    %8 = vsyncpa [#allocation3], 0
    // Predicated region
    $region2: #{tpu_custom_call.1} parent=1 // pred_check
      _
    $region3: #{tpu_custom_call.1} parent=1 // pred_check_branch
      %10 = sbr.rel (0) target = $region5
    $region4: #{tpu_custom_call.1} parent=1 // pred_region
      %12 = vsyncadd [#allocation3], 0
      %s14 = sshll.u32 %s0, 4
      %s15 = int_to_ptr.hbm [resolvable:$true] %s14
      %s16 = sshll.u32 [#allocation2], 4
      %s17 = int_to_ptr.vmem [resolvable:$true] %s16
      %19 = dma.hbm_to_vmem [thread:$0]  %s15, 128, %s17, [#allocation3]
    $region5: #{tpu_custom_call.1} parent=1 // pred_fallthru
      _
    // Predicated region
    $region6: #{tpu_custom_call.1} parent=1 // pred_check
      _
    $region7: #{tpu_custom_call.1} parent=1 // pred_check_branch
      %21 = sbr.rel (0) target = $region9
    $region8: #{tpu_custom_call.1} parent=1 // pred_region
      %23 = dma.done [#allocation3], 128
    $region9: #{tpu_custom_call.1} parent=1 // pred_fallthru
      _
    %v24 = vld [vmem:[#allocation2] sm:$0xff]
    %vm25 = vcmask 130048
    %v26 = vsel %vm25, %v24, -inf
    %27 = vmax.xlane.f32.xlu0 %v26
    %v28 = vpop.xlane.xlu0 %27
    %v29 = vsub.f32 %v24, %v28
    %v30 = vmul.f32 %v29, 1.442695
    %v31 = vpow.pop %v30
    %v32 = vsel %vm25, %v31, 0.0
    %33 = vadd.xlane.f32.xlu0 %v32
    %v34 = vpop.xlane.xlu0 %33
    %v35 = vlog2.pop %v34
    %v36 = vmul.f32 %v35, 0.6931472
    %v37 = vadd.f32 %v28, %v36
    %vm38 = vcmask 7168
    %39 = vst.msk [vmem:[%s1] sm:$0xff] %vm38, %v37
    %v40 = vlaneseq
    %v41 = vand.u32 %v40, 127
    %vm42 = vcmp.eq.f32.partialorder %v29, 0.0
    %v43 = vsel %vm42, %v41, 16
    %v44 = vsel %vm25, %v43, 2147483647
    %v45 = vand.u32 %v44, 65535
    %v46 = vshra.s32 %v44, 16
    %v47 = vcvt.s32.f32 %v45
    %v48 = vcvt.s32.f32 %v46
    %49 = vmin.xlane.f32.xlu0 %v48
    %v50 = vpop.xlane.xlu0 %49
    %vm51 = vcmp.eq.f32.partialorder %v48, %v50
    %v52 = vsel %vm51, %v47, inf
    %53 = vmin.xlane.f32.xlu0 %v52
    %v54 = vpop.xlane.xlu0 %53
    %v55 = vcvt.f32.s32 %v54
    %v56 = vcvt.f32.s32 %v50
    %v57 = vshll.u32 %v56, 16
    %v58 = vadd.s32 %v57, %v55
    %59 = vst.msk [vmem:[%s2] sm:$0xff] %vm38, %v58
    // Predicated region
    $region10: #{tpu_custom_call.1} parent=1 // pred_check
      _
    $region11: #{tpu_custom_call.1} parent=1 // pred_check_branch
      %61 = sbr.rel (0) target = $region13
    $region12: #{tpu_custom_call.1} parent=1 // pred_region
      _
    $region13: #{tpu_custom_call.1} parent=1 // pred_fallthru
      _
    // Predicated region
    $region14: #{tpu_custom_call.1} parent=1 // pred_check
      _
    $region15: #{tpu_custom_call.1} parent=1 // pred_check_branch
      %63 = sbr.rel (0) target = $region17
    $region16: #{tpu_custom_call.1} parent=1 // pred_region
      _
    $region17: #{tpu_custom_call.1} parent=1 // pred_fallthru
      _
    // Predicated region
    $region18: #{tpu_custom_call.1} parent=1 // pred_check
      _
    $region19: #{tpu_custom_call.1} parent=1 // pred_check_branch
      %65 = sbr.rel (0) target = $region21
    $region20: #{tpu_custom_call.1} parent=1 // pred_region
      _
    $region21: #{tpu_custom_call.1} parent=1 // pred_fallthru
      _
    // Predicated region
    $region22: #{tpu_custom_call.1} parent=1 // pred_check
      _
    $region23: #{tpu_custom_call.1} parent=1 // pred_check_branch
      %67 = sbr.rel (0) target = $region25
    $region24: #{tpu_custom_call.1} parent=1 // pred_region
      _
    $region25: #{tpu_custom_call.1} parent=1 // pred_fallthru
      _
    %68 = vsyncpa [#allocation3], 1

</llo_original>
